<compile_context>
chip_gen: v7x
topology: tpu7x:2x2x1
jax: 0.10.0
libtpu: 0.0.40
codegen_flags: <defaults>
</compile_context>

<pallas_src>
import numpy as np
import jax
import jax.numpy as jnp
from jax.experimental import pallas as pl
from jax.experimental.pallas import tpu as pltpu


def _round_up(x: int, m: int) -> int:
    return (x + m - 1) // m * m


def _make_gather_kernel(T: int, tb: int, n_blocks: int):
    """Build the gather kernel for a fixed (T, tb, n_blocks) configuration."""
    rem = T - (n_blocks - 1) * tb          # valid rows in the last block (1..tb)

    def kernel(ids_ref, w_hbm, o_ref, buf, sem):
        # ids_ref : SMEM (T,) int32      -- scalar-prefetched token ids
        # w_hbm   : HBM  (V, D)          -- weight table, manual DMA source
        # o_ref   : VMEM (tb, D)         -- auto-pipelined output block
        # buf     : VMEM (2, tb, D)      -- double buffer for gathered rows
        # sem     : DMA sems (2, tb)     -- one per in-flight row copy
        i = pl.program_id(0)

        def issue_block(blk, slot):
            """Start the per-row gather DMAs of block `blk` into buffer `slot`."""
            base = blk * tb
            static = isinstance(blk, int)
            for r in range(tb):
                def start(r=r):
                    tok = ids_ref[base + r]                   # SMEM scalar read
                    pltpu.make_async_copy(w_hbm.at[tok],      # (D,) row in HBM
                                          buf.at[slot, r],    # (D,) row in VMEM
                                          sem.at[slot, r]).start()
                if static:
                    if blk * tb + r < T:                      # guard resolved at trace time
                        start()
                elif r < rem:
                    start()                                   # valid in every block
                else:
                    pl.when(base + r < T)(start)              # tail rows of the last block

        def wait_block(blk, slot):
            """Wait on block `blk`'s row DMAs (mirrors issue_block's guards)."""
            base = blk * tb
            for r in range(tb):
                def wait(r=r):
                    pltpu.make_async_copy(w_hbm.at[0],        # same shape/sem as the start
                                          buf.at[slot, r],
                                          sem.at[slot, r]).wait()
                if r < rem:
                    wait()
                else:
                    pl.when(base + r < T)(wait)

        # Pipeline prime: fetch block 0 on the first step.
        @pl.when(i == 0)
        def _():
            issue_block(0, 0)

        # Prefetch the next block *before* waiting on the current one.
        @pl.when(i + 1 < n_blocks)
        def _():
            issue_block(i + 1, (i + 1) % 2)

        slot = i % 2
        wait_block(i, slot)
        o_ref[...] = buf[slot]           # VMEM->VMEM copy; vld/vst slots are otherwise idle

    return kernel


def vocab_parallel_embedding(x, weight, *, tb=128):
    """Single-shard (tp_size == 1) VocabParallelEmbedding.forward.

    x: integer token ids of any shape; weight: (V, D).  Returns x.shape + (D,).
    Out-of-range / negative ids are clamped to [0, V-1] (F.embedding would raise).
    """
    orig_shape = x.shape
    V, D = weight.shape
    T = int(np.prod(orig_shape)) if orig_shape else 1

    # Clamp ids so a bad token can never DMA out of bounds.
    ids = jnp.clip(jnp.reshape(x, (-1,)).astype(jnp.int32), 0, V - 1)

    # Token block per grid step: multiple of 8 (sublane), no larger than needed.
    # TODO(synk): for very long prefill (hundreds of thousands of tokens), chunk the
    # pallas_call over the token axis so the scalar-prefetched id vector fits SMEM.
    tb = _round_up(max(8, min(tb, _round_up(T, 8))), 8)
    n_blocks = -(-T // tb)

    kernel = _make_gather_kernel(T, tb, n_blocks)

    # TODO(synk): tp_size > 1 path (vocab-range masking + dist.all_reduce) needs a
    # multi-device collective; single-shard (tp_size == 1) semantics implemented here.
    out = pl.pallas_call(
        kernel,
        out_shape=jax.ShapeDtypeStruct((T, D), weight.dtype),
        grid_spec=pltpu.PrefetchScalarGridSpec(
            num_scalar_prefetch=1,                           # ids -> SMEM
            grid=(n_blocks,),
            in_specs=[pl.BlockSpec(memory_space=pl.ANY)],    # weight stays in HBM
            out_specs=pl.BlockSpec((tb, D), lambda i, ids_sm: (i, 0)),
            scratch_shapes=[
                pltpu.VMEM((2, tb, D), weight.dtype),        # row-gather double buffer
                pltpu.SemaphoreType.DMA((2, tb)),            # one sem per in-flight row copy
            ],
        ),
        # Cross-step prefetch carries state in scratch/semaphores -> the token-block
        # axis is a sequential dependency, so it must be "arbitrary", not "parallel".
        compiler_params=pltpu.CompilerParams(
            dimension_semantics=("arbitrary",)),
    )(ids, weight)

    return out.reshape(*orig_shape, D)


if __name__ == "__main__":
    key = jax.random.PRNGKey(0)
    num_embeddings, embedding_dim = 256, 128      # small synthetic vocab / hidden
    kw, kx, kx2 = jax.random.split(key, 3)

    # deterministic parameter init (the module only declares the shape)
    weight = (jax.random.normal(kw, (num_embeddings, embedding_dim), jnp.float32)
              * 0.02)

    # (1) multi-block path (exercises the cross-block prefetch pipeline): tb=8, 2 blocks.
    batch, seq = 2, 8
    x = jax.random.randint(kx, (batch, seq), 0, num_embeddings, dtype=jnp.int32)
    y = jax.block_until_ready(vocab_parallel_embedding(x, weight, tb=8))
    ref = jnp.take(weight, x.reshape(-1), axis=0).reshape(batch, seq, embedding_dim)
    assert y.shape == (batch, seq, embedding_dim)
    np.testing.assert_allclose(np.asarray(y), np.asarray(ref), rtol=0, atol=0)

    # (2) ragged tail (T not a multiple of tb): 2*7 tokens, tb=8 -> partial last block.
    x2 = jax.random.randint(kx2, (2, 7), 0, num_embeddings, dtype=jnp.int32)
    y2 = jax.block_until_ready(vocab_parallel_embedding(x2, weight, tb=8))
    ref2 = jnp.take(weight, x2.reshape(-1), axis=0).reshape(2, 7, embedding_dim)
    np.testing.assert_allclose(np.asarray(y2), np.asarray(ref2), rtol=0, atol=0)

    print("KERNEL_OK")
</pallas_src>

<mosaic_0001>
module attributes {stable_mosaic.version = 11 : i64} {
  func.func @kernel(%arg0: i32, %arg1: memref<16xi32, #tpu.memory_space<smem>>, %arg2: memref<256x128xf32, #tpu.memory_space<any>>, %arg3: memref<8x128xf32, #tpu.memory_space<vmem>>, %arg4: memref<2x8x128xf32, #tpu.memory_space<vmem>>, %arg5: memref<2x8x!tpu.dma_semaphore, #tpu.memory_space<semaphore_mem>>) attributes {dimension_semantics = [#tpu.dimension_semantics<arbitrary>], iteration_bounds = array<i64: 2>, scalar_prefetch = 1 : i64, scratch_operands = 2 : i64, tpu.core_type = #tpu.core_type<tc>, window_params = [{}, {transform_indices = @transform_1, window_bounds = array<i64: 8, 128>}]} {
    %c0_i32 = arith.constant 0 : i32
    %0 = arith.cmpi eq, %arg0, %c0_i32 : i32
    %1 = arith.extui %0 : i1 to i32
    %c0_i32_0 = arith.constant 0 : i32
    %2 = arith.cmpi ne, %1, %c0_i32_0 : i32
    scf.if %2 {
      %c0_46 = arith.constant 0 : index
      %69 = memref.load %arg1[%c0_46] : memref<16xi32, #tpu.memory_space<smem>>
      %c0_i32_47 = arith.constant 0 : i32
      %c0_i32_48 = arith.constant 0 : i32
      %c0_i32_49 = arith.constant 0 : i32
      %c0_i32_50 = arith.constant 0 : i32
      %c0_i32_51 = arith.constant 0 : i32
      %70 = tpu.memref_slice %arg2[%69, %c0_i32_51] : memref<256x128xf32, #tpu.memory_space<any>> -> memref<1x128xf32, #tpu.memory_space<any>>
      %71 = tpu.memref_squeeze %70 : memref<1x128xf32, #tpu.memory_space<any>> -> memref<128xf32, #tpu.memory_space<any>>
      %c0_i32_52 = arith.constant 0 : i32
      %72 = tpu.memref_slice %arg4[%c0_i32_47, %c0_i32_48, %c0_i32_52] : memref<2x8x128xf32, #tpu.memory_space<vmem>> -> memref<1x1x128xf32, #tpu.memory_space<vmem>>
      %73 = tpu.memref_squeeze %72 : memref<1x1x128xf32, #tpu.memory_space<vmem>> -> memref<128xf32, #tpu.memory_space<vmem>>
      %74 = tpu.memref_slice %arg5[%c0_i32_49, %c0_i32_50] : memref<2x8x!tpu.dma_semaphore, #tpu.memory_space<semaphore_mem>> -> memref<1x1x!tpu.dma_semaphore, #tpu.memory_space<semaphore_mem>>
      %75 = tpu.memref_squeeze %74 : memref<1x1x!tpu.dma_semaphore, #tpu.memory_space<semaphore_mem>> -> memref<!tpu.dma_semaphore, #tpu.memory_space<semaphore_mem>>
      tpu.enqueue_dma source(%71 : memref<128xf32, #tpu.memory_space<any>>) target(%73 : memref<128xf32, #tpu.memory_space<vmem>>) target_semaphore(%75 : memref<!tpu.dma_semaphore, #tpu.memory_space<semaphore_mem>>)
      %c1 = arith.constant 1 : index
      %76 = memref.load %arg1[%c1] : memref<16xi32, #tpu.memory_space<smem>>
      %c0_i32_53 = arith.constant 0 : i32
      %c1_i32_54 = arith.constant 1 : i32
      %c0_i32_55 = arith.constant 0 : i32
      %c1_i32_56 = arith.constant 1 : i32
      %c0_i32_57 = arith.constant 0 : i32
      %77 = tpu.memref_slice %arg2[%76, %c0_i32_57] : memref<256x128xf32, #tpu.memory_space<any>> -> memref<1x128xf32, #tpu.memory_space<any>>
      %78 = tpu.memref_squeeze %77 : memref<1x128xf32, #tpu.memory_space<any>> -> memref<128xf32, #tpu.memory_space<any>>
      %c0_i32_58 = arith.constant 0 : i32
      %79 = tpu.memref_slice %arg4[%c0_i32_53, %c1_i32_54, %c0_i32_58] : memref<2x8x128xf32, #tpu.memory_space<vmem>> -> memref<1x1x128xf32, #tpu.memory_space<vmem>>
      %80 = tpu.memref_squeeze %79 : memref<1x1x128xf32, #tpu.memory_space<vmem>> -> memref<128xf32, #tpu.memory_space<vmem>>
      %81 = tpu.memref_slice %arg5[%c0_i32_55, %c1_i32_56] : memref<2x8x!tpu.dma_semaphore, #tpu.memory_space<semaphore_mem>> -> memref<1x1x!tpu.dma_semaphore, #tpu.memory_space<semaphore_mem>>
      %82 = tpu.memref_squeeze %81 : memref<1x1x!tpu.dma_semaphore, #tpu.memory_space<semaphore_mem>> -> memref<!tpu.dma_semaphore, #tpu.memory_space<semaphore_mem>>
      tpu.enqueue_dma source(%78 : memref<128xf32, #tpu.memory_space<any>>) target(%80 : memref<128xf32, #tpu.memory_space<vmem>>) target_semaphore(%82 : memref<!tpu.dma_semaphore, #tpu.memory_space<semaphore_mem>>)
      %c2 = arith.constant 2 : index
      %83 = memref.load %arg1[%c2] : memref<16xi32, #tpu.memory_space<smem>>
      %c0_i32_59 = arith.constant 0 : i32
      %c2_i32_60 = arith.constant 2 : i32
      %c0_i32_61 = arith.constant 0 : i32
      %c2_i32_62 = arith.constant 2 : i32
      %c0_i32_63 = arith.constant 0 : i32
      %84 = tpu.memref_slice %arg2[%83, %c0_i32_63] : memref<256x128xf32, #tpu.memory_space<any>> -> memref<1x128xf32, #tpu.memory_space<any>>
      %85 = tpu.memref_squeeze %84 : memref<1x128xf32, #tpu.memory_space<any>> -> memref<128xf32, #tpu.memory_space<any>>
      %c0_i32_64 = arith.constant 0 : i32
      %86 = tpu.memref_slice %arg4[%c0_i32_59, %c2_i32_60, %c0_i32_64] : memref<2x8x128xf32, #tpu.memory_space<vmem>> -> memref<1x1x128xf32, #tpu.memory_space<vmem>>
      %87 = tpu.memref_squeeze %86 : memref<1x1x128xf32, #tpu.memory_space<vmem>> -> memref<128xf32, #tpu.memory_space<vmem>>
      %88 = tpu.memref_slice %arg5[%c0_i32_61, %c2_i32_62] : memref<2x8x!tpu.dma_semaphore, #tpu.memory_space<semaphore_mem>> -> memref<1x1x!tpu.dma_semaphore, #tpu.memory_space<semaphore_mem>>
      %89 = tpu.memref_squeeze %88 : memref<1x1x!tpu.dma_semaphore, #tpu.memory_space<semaphore_mem>> -> memref<!tpu.dma_semaphore, #tpu.memory_space<semaphore_mem>>
      tpu.enqueue_dma source(%85 : memref<128xf32, #tpu.memory_space<any>>) target(%87 : memref<128xf32, #tpu.memory_space<vmem>>) target_semaphore(%89 : memref<!tpu.dma_semaphore, #tpu.memory_space<semaphore_mem>>)
      %c3 = arith.constant 3 : index
      %90 = memref.load %arg1[%c3] : memref<16xi32, #tpu.memory_space<smem>>
      %c0_i32_65 = arith.constant 0 : i32
      %c3_i32_66 = arith.constant 3 : i32
      %c0_i32_67 = arith.constant 0 : i32
      %c3_i32_68 = arith.constant 3 : i32
      %c0_i32_69 = arith.constant 0 : i32
      %91 = tpu.memref_slice %arg2[%90, %c0_i32_69] : memref<256x128xf32, #tpu.memory_space<any>> -> memref<1x128xf32, #tpu.memory_space<any>>
      %92 = tpu.memref_squeeze %91 : memref<1x128xf32, #tpu.memory_space<any>> -> memref<128xf32, #tpu.memory_space<any>>
      %c0_i32_70 = arith.constant 0 : i32
      %93 = tpu.memref_slice %arg4[%c0_i32_65, %c3_i32_66, %c0_i32_70] : memref<2x8x128xf32, #tpu.memory_space<vmem>> -> memref<1x1x128xf32, #tpu.memory_space<vmem>>
      %94 = tpu.memref_squeeze %93 : memref<1x1x128xf32, #tpu.memory_space<vmem>> -> memref<128xf32, #tpu.memory_space<vmem>>
      %95 = tpu.memref_slice %arg5[%c0_i32_67, %c3_i32_68] : memref<2x8x!tpu.dma_semaphore, #tpu.memory_space<semaphore_mem>> -> memref<1x1x!tpu.dma_semaphore, #tpu.memory_space<semaphore_mem>>
      %96 = tpu.memref_squeeze %95 : memref<1x1x!tpu.dma_semaphore, #tpu.memory_space<semaphore_mem>> -> memref<!tpu.dma_semaphore, #tpu.memory_space<semaphore_mem>>
      tpu.enqueue_dma source(%92 : memref<128xf32, #tpu.memory_space<any>>) target(%94 : memref<128xf32, #tpu.memory_space<vmem>>) target_semaphore(%96 : memref<!tpu.dma_semaphore, #tpu.memory_space<semaphore_mem>>)
      %c4 = arith.constant 4 : index
      %97 = memref.load %arg1[%c4] : memref<16xi32, #tpu.memory_space<smem>>
      %c0_i32_71 = arith.constant 0 : i32
      %c4_i32_72 = arith.constant 4 : i32
      %c0_i32_73 = arith.constant 0 : i32
      %c4_i32_74 = arith.constant 4 : i32
      %c0_i32_75 = arith.constant 0 : i32
      %98 = tpu.memref_slice %arg2[%97, %c0_i32_75] : memref<256x128xf32, #tpu.memory_space<any>> -> memref<1x128xf32, #tpu.memory_space<any>>
      %99 = tpu.memref_squeeze %98 : memref<1x128xf32, #tpu.memory_space<any>> -> memref<128xf32, #tpu.memory_space<any>>
      %c0_i32_76 = arith.constant 0 : i32
      %100 = tpu.memref_slice %arg4[%c0_i32_71, %c4_i32_72, %c0_i32_76] : memref<2x8x128xf32, #tpu.memory_space<vmem>> -> memref<1x1x128xf32, #tpu.memory_space<vmem>>
      %101 = tpu.memref_squeeze %100 : memref<1x1x128xf32, #tpu.memory_space<vmem>> -> memref<128xf32, #tpu.memory_space<vmem>>
      %102 = tpu.memref_slice %arg5[%c0_i32_73, %c4_i32_74] : memref<2x8x!tpu.dma_semaphore, #tpu.memory_space<semaphore_mem>> -> memref<1x1x!tpu.dma_semaphore, #tpu.memory_space<semaphore_mem>>
      %103 = tpu.memref_squeeze %102 : memref<1x1x!tpu.dma_semaphore, #tpu.memory_space<semaphore_mem>> -> memref<!tpu.dma_semaphore, #tpu.memory_space<semaphore_mem>>
      tpu.enqueue_dma source(%99 : memref<128xf32, #tpu.memory_space<any>>) target(%101 : memref<128xf32, #tpu.memory_space<vmem>>) target_semaphore(%103 : memref<!tpu.dma_semaphore, #tpu.memory_space<semaphore_mem>>)
      %c5 = arith.constant 5 : index
      %104 = memref.load %arg1[%c5] : memref<16xi32, #tpu.memory_space<smem>>
      %c0_i32_77 = arith.constant 0 : i32
      %c5_i32_78 = arith.constant 5 : i32
      %c0_i32_79 = arith.constant 0 : i32
      %c5_i32_80 = arith.constant 5 : i32
      %c0_i32_81 = arith.constant 0 : i32
      %105 = tpu.memref_slice %arg2[%104, %c0_i32_81] : memref<256x128xf32, #tpu.memory_space<any>> -> memref<1x128xf32, #tpu.memory_space<any>>
      %106 = tpu.memref_squeeze %105 : memref<1x128xf32, #tpu.memory_space<any>> -> memref<128xf32, #tpu.memory_space<any>>
      %c0_i32_82 = arith.constant 0 : i32
      %107 = tpu.memref_slice %arg4[%c0_i32_77, %c5_i32_78, %c0_i32_82] : memref<2x8x128xf32, #tpu.memory_space<vmem>> -> memref<1x1x128xf32, #tpu.memory_space<vmem>>
      %108 = tpu.memref_squeeze %107 : memref<1x1x128xf32, #tpu.memory_space<vmem>> -> memref<128xf32, #tpu.memory_space<vmem>>
      %109 = tpu.memref_slice %arg5[%c0_i32_79, %c5_i32_80] : memref<2x8x!tpu.dma_semaphore, #tpu.memory_space<semaphore_mem>> -> memref<1x1x!tpu.dma_semaphore, #tpu.memory_space<semaphore_mem>>
      %110 = tpu.memref_squeeze %109 : memref<1x1x!tpu.dma_semaphore, #tpu.memory_space<semaphore_mem>> -> memref<!tpu.dma_semaphore, #tpu.memory_space<semaphore_mem>>
      tpu.enqueue_dma source(%106 : memref<128xf32, #tpu.memory_space<any>>) target(%108 : memref<128xf32, #tpu.memory_space<vmem>>) target_semaphore(%110 : memref<!tpu.dma_semaphore, #tpu.memory_space<semaphore_mem>>)
      %c6 = arith.constant 6 : index
      %111 = memref.load %arg1[%c6] : memref<16xi32, #tpu.memory_space<smem>>
      %c0_i32_83 = arith.constant 0 : i32
      %c6_i32_84 = arith.constant 6 : i32
      %c0_i32_85 = arith.constant 0 : i32
      %c6_i32_86 = arith.constant 6 : i32
      %c0_i32_87 = arith.constant 0 : i32
      %112 = tpu.memref_slice %arg2[%111, %c0_i32_87] : memref<256x128xf32, #tpu.memory_space<any>> -> memref<1x128xf32, #tpu.memory_space<any>>
      %113 = tpu.memref_squeeze %112 : memref<1x128xf32, #tpu.memory_space<any>> -> memref<128xf32, #tpu.memory_space<any>>
      %c0_i32_88 = arith.constant 0 : i32
      %114 = tpu.memref_slice %arg4[%c0_i32_83, %c6_i32_84, %c0_i32_88] : memref<2x8x128xf32, #tpu.memory_space<vmem>> -> memref<1x1x128xf32, #tpu.memory_space<vmem>>
      %115 = tpu.memref_squeeze %114 : memref<1x1x128xf32, #tpu.memory_space<vmem>> -> memref<128xf32, #tpu.memory_space<vmem>>
      %116 = tpu.memref_slice %arg5[%c0_i32_85, %c6_i32_86] : memref<2x8x!tpu.dma_semaphore, #tpu.memory_space<semaphore_mem>> -> memref<1x1x!tpu.dma_semaphore, #tpu.memory_space<semaphore_mem>>
      %117 = tpu.memref_squeeze %116 : memref<1x1x!tpu.dma_semaphore, #tpu.memory_space<semaphore_mem>> -> memref<!tpu.dma_semaphore, #tpu.memory_space<semaphore_mem>>
      tpu.enqueue_dma source(%113 : memref<128xf32, #tpu.memory_space<any>>) target(%115 : memref<128xf32, #tpu.memory_space<vmem>>) target_semaphore(%117 : memref<!tpu.dma_semaphore, #tpu.memory_space<semaphore_mem>>)
      %c7 = arith.constant 7 : index
      %118 = memref.load %arg1[%c7] : memref<16xi32, #tpu.memory_space<smem>>
      %c0_i32_89 = arith.constant 0 : i32
      %c7_i32_90 = arith.constant 7 : i32
      %c0_i32_91 = arith.constant 0 : i32
      %c7_i32_92 = arith.constant 7 : i32
      %c0_i32_93 = arith.constant 0 : i32
      %119 = tpu.memref_slice %arg2[%118, %c0_i32_93] : memref<256x128xf32, #tpu.memory_space<any>> -> memref<1x128xf32, #tpu.memory_space<any>>
      %120 = tpu.memref_squeeze %119 : memref<1x128xf32, #tpu.memory_space<any>> -> memref<128xf32, #tpu.memory_space<any>>
      %c0_i32_94 = arith.constant 0 : i32
      %121 = tpu.memref_slice %arg4[%c0_i32_89, %c7_i32_90, %c0_i32_94] : memref<2x8x128xf32, #tpu.memory_space<vmem>> -> memref<1x1x128xf32, #tpu.memory_space<vmem>>
      %122 = tpu.memref_squeeze %121 : memref<1x1x128xf32, #tpu.memory_space<vmem>> -> memref<128xf32, #tpu.memory_space<vmem>>
      %123 = tpu.memref_slice %arg5[%c0_i32_91, %c7_i32_92] : memref<2x8x!tpu.dma_semaphore, #tpu.memory_space<semaphore_mem>> -> memref<1x1x!tpu.dma_semaphore, #tpu.memory_space<semaphore_mem>>
      %124 = tpu.memref_squeeze %123 : memref<1x1x!tpu.dma_semaphore, #tpu.memory_space<semaphore_mem>> -> memref<!tpu.dma_semaphore, #tpu.memory_space<semaphore_mem>>
      tpu.enqueue_dma source(%120 : memref<128xf32, #tpu.memory_space<any>>) target(%122 : memref<128xf32, #tpu.memory_space<vmem>>) target_semaphore(%124 : memref<!tpu.dma_semaphore, #tpu.memory_space<semaphore_mem>>)
    } else {
    }
    %c1_i32 = arith.constant 1 : i32
    %3 = arith.addi %arg0, %c1_i32 : i32
    %c2_i32 = arith.constant 2 : i32
    %4 = arith.cmpi slt, %3, %c2_i32 : i32
    %5 = arith.extui %4 : i1 to i32
    %c0_i32_1 = arith.constant 0 : i32
    %6 = arith.cmpi ne, %5, %c0_i32_1 : i32
    scf.if %6 {
      %c1_i32_46 = arith.constant 1 : i32
      %69 = arith.addi %arg0, %c1_i32_46 : i32
      %c1_i32_47 = arith.constant 1 : i32
      %70 = arith.addi %arg0, %c1_i32_47 : i32
      %c2_i32_48 = arith.constant 2 : i32
      %c0_i32_49 = arith.constant 0 : i32
      %71 = arith.cmpi eq, %c2_i32_48, %c0_i32_49 : i32
      %c1_i32_50 = arith.constant 1 : i32
      %72 = arith.select %71, %c1_i32_50, %c2_i32_48 : i32
      %73 = arith.remsi %70, %72 : i32
      %c0_i32_51 = arith.constant 0 : i32
      %74 = arith.cmpi ne, %73, %c0_i32_51 : i32
      %c0_i32_52 = arith.constant 0 : i32
      %75 = arith.cmpi slt, %73, %c0_i32_52 : i32
      %c0_i32_53 = arith.constant 0 : i32
      %76 = arith.cmpi slt, %72, %c0_i32_53 : i32
      %77 = arith.xori %75, %76 : i1
      %78 = arith.andi %77, %74 : i1
      %79 = arith.addi %73, %72 : i32
      %80 = arith.select %78, %79, %73 : i32
      %c8_i32 = arith.constant 8 : i32
      %81 = arith.muli %69, %c8_i32 : i32
      %c0_i32_54 = arith.constant 0 : i32
      %82 = arith.addi %81, %c0_i32_54 : i32
      %83 = arith.index_cast %82 : i32 to index
      %84 = memref.load %arg1[%83] : memref<16xi32, #tpu.memory_space<smem>>
      %c0_i32_55 = arith.constant 0 : i32
      %c0_i32_56 = arith.constant 0 : i32
      %c0_i32_57 = arith.constant 0 : i32
      %85 = tpu.memref_slice %arg2[%84, %c0_i32_57] : memref<256x128xf32, #tpu.memory_space<any>> -> memref<1x128xf32, #tpu.memory_space<any>>
      %86 = tpu.memref_squeeze %85 : memref<1x128xf32, #tpu.memory_space<any>> -> memref<128xf32, #tpu.memory_space<any>>
      %c0_i32_58 = arith.constant 0 : i32
      %87 = tpu.memref_slice %arg4[%80, %c0_i32_55, %c0_i32_58] : memref<2x8x128xf32, #tpu.memory_space<vmem>> -> memref<1x1x128xf32, #tpu.memory_space<vmem>>
      %88 = tpu.memref_squeeze %87 : memref<1x1x128xf32, #tpu.memory_space<vmem>> -> memref<128xf32, #tpu.memory_space<vmem>>
      %89 = tpu.memref_slice %arg5[%80, %c0_i32_56] : memref<2x8x!tpu.dma_semaphore, #tpu.memory_space<semaphore_mem>> -> memref<1x1x!tpu.dma_semaphore, #tpu.memory_space<semaphore_mem>>
      %90 = tpu.memref_squeeze %89 : memref<1x1x!tpu.dma_semaphore, #tpu.memory_space<semaphore_mem>> -> memref<!tpu.dma_semaphore, #tpu.memory_space<semaphore_mem>>
      tpu.enqueue_dma source(%86 : memref<128xf32, #tpu.memory_space<any>>) target(%88 : memref<128xf32, #tpu.memory_space<vmem>>) target_semaphore(%90 : memref<!tpu.dma_semaphore, #tpu.memory_space<semaphore_mem>>)
      %c1_i32_59 = arith.constant 1 : i32
      %91 = arith.addi %81, %c1_i32_59 : i32
      %92 = arith.index_cast %91 : i32 to index
      %93 = memref.load %arg1[%92] : memref<16xi32, #tpu.memory_space<smem>>
      %c1_i32_60 = arith.constant 1 : i32
      %c1_i32_61 = arith.constant 1 : i32
      %c0_i32_62 = arith.constant 0 : i32
      %94 = tpu.memref_slice %arg2[%93, %c0_i32_62] : memref<256x128xf32, #tpu.memory_space<any>> -> memref<1x128xf32, #tpu.memory_space<any>>
      %95 = tpu.memref_squeeze %94 : memref<1x128xf32, #tpu.memory_space<any>> -> memref<128xf32, #tpu.memory_space<any>>
      %c0_i32_63 = arith.constant 0 : i32
      %96 = tpu.memref_slice %arg4[%80, %c1_i32_60, %c0_i32_63] : memref<2x8x128xf32, #tpu.memory_space<vmem>> -> memref<1x1x128xf32, #tpu.memory_space<vmem>>
      %97 = tpu.memref_squeeze %96 : memref<1x1x128xf32, #tpu.memory_space<vmem>> -> memref<128xf32, #tpu.memory_space<vmem>>
      %98 = tpu.memref_slice %arg5[%80, %c1_i32_61] : memref<2x8x!tpu.dma_semaphore, #tpu.memory_space<semaphore_mem>> -> memref<1x1x!tpu.dma_semaphore, #tpu.memory_space<semaphore_mem>>
      %99 = tpu.memref_squeeze %98 : memref<1x1x!tpu.dma_semaphore, #tpu.memory_space<semaphore_mem>> -> memref<!tpu.dma_semaphore, #tpu.memory_space<semaphore_mem>>
      tpu.enqueue_dma source(%95 : memref<128xf32, #tpu.memory_space<any>>) target(%97 : memref<128xf32, #tpu.memory_space<vmem>>) target_semaphore(%99 : memref<!tpu.dma_semaphore, #tpu.memory_space<semaphore_mem>>)
      %c2_i32_64 = arith.constant 2 : i32
      %100 = arith.addi %81, %c2_i32_64 : i32
      %101 = arith.index_cast %100 : i32 to index
      %102 = memref.load %arg1[%101] : memref<16xi32, #tpu.memory_space<smem>>
      %c2_i32_65 = arith.constant 2 : i32
      %c2_i32_66 = arith.constant 2 : i32
      %c0_i32_67 = arith.constant 0 : i32
      %103 = tpu.memref_slice %arg2[%102, %c0_i32_67] : memref<256x128xf32, #tpu.memory_space<any>> -> memref<1x128xf32, #tpu.memory_space<any>>
      %104 = tpu.memref_squeeze %103 : memref<1x128xf32, #tpu.memory_space<any>> -> memref<128xf32, #tpu.memory_space<any>>
      %c0_i32_68 = arith.constant 0 : i32
      %105 = tpu.memref_slice %arg4[%80, %c2_i32_65, %c0_i32_68] : memref<2x8x128xf32, #tpu.memory_space<vmem>> -> memref<1x1x128xf32, #tpu.memory_space<vmem>>
      %106 = tpu.memref_squeeze %105 : memref<1x1x128xf32, #tpu.memory_space<vmem>> -> memref<128xf32, #tpu.memory_space<vmem>>
      %107 = tpu.memref_slice %arg5[%80, %c2_i32_66] : memref<2x8x!tpu.dma_semaphore, #tpu.memory_space<semaphore_mem>> -> memref<1x1x!tpu.dma_semaphore, #tpu.memory_space<semaphore_mem>>
      %108 = tpu.memref_squeeze %107 : memref<1x1x!tpu.dma_semaphore, #tpu.memory_space<semaphore_mem>> -> memref<!tpu.dma_semaphore, #tpu.memory_space<semaphore_mem>>
      tpu.enqueue_dma source(%104 : memref<128xf32, #tpu.memory_space<any>>) target(%106 : memref<128xf32, #tpu.memory_space<vmem>>) target_semaphore(%108 : memref<!tpu.dma_semaphore, #tpu.memory_space<semaphore_mem>>)
      %c3_i32_69 = arith.constant 3 : i32
      %109 = arith.addi %81, %c3_i32_69 : i32
      %110 = arith.index_cast %109 : i32 to index
      %111 = memref.load %arg1[%110] : memref<16xi32, #tpu.memory_space<smem>>
      %c3_i32_70 = arith.constant 3 : i32
      %c3_i32_71 = arith.constant 3 : i32
      %c0_i32_72 = arith.constant 0 : i32
      %112 = tpu.memref_slice %arg2[%111, %c0_i32_72] : memref<256x128xf32, #tpu.memory_space<any>> -> memref<1x128xf32, #tpu.memory_space<any>>
      %113 = tpu.memref_squeeze %112 : memref<1x128xf32, #tpu.memory_space<any>> -> memref<128xf32, #tpu.memory_space<any>>
      %c0_i32_73 = arith.constant 0 : i32
      %114 = tpu.memref_slice %arg4[%80, %c3_i32_70, %c0_i32_73] : memref<2x8x128xf32, #tpu.memory_space<vmem>> -> memref<1x1x128xf32, #tpu.memory_space<vmem>>
      %115 = tpu.memref_squeeze %114 : memref<1x1x128xf32, #tpu.memory_space<vmem>> -> memref<128xf32, #tpu.memory_space<vmem>>
      %116 = tpu.memref_slice %arg5[%80, %c3_i32_71] : memref<2x8x!tpu.dma_semaphore, #tpu.memory_space<semaphore_mem>> -> memref<1x1x!tpu.dma_semaphore, #tpu.memory_space<semaphore_mem>>
      %117 = tpu.memref_squeeze %116 : memref<1x1x!tpu.dma_semaphore, #tpu.memory_space<semaphore_mem>> -> memref<!tpu.dma_semaphore, #tpu.memory_space<semaphore_mem>>
      tpu.enqueue_dma source(%113 : memref<128xf32, #tpu.memory_space<any>>) target(%115 : memref<128xf32, #tpu.memory_space<vmem>>) target_semaphore(%117 : memref<!tpu.dma_semaphore, #tpu.memory_space<semaphore_mem>>)
      %c4_i32_74 = arith.constant 4 : i32
      %118 = arith.addi %81, %c4_i32_74 : i32
      %119 = arith.index_cast %118 : i32 to index
      %120 = memref.load %arg1[%119] : memref<16xi32, #tpu.memory_space<smem>>
      %c4_i32_75 = arith.constant 4 : i32
      %c4_i32_76 = arith.constant 4 : i32
      %c0_i32_77 = arith.constant 0 : i32
      %121 = tpu.memref_slice %arg2[%120, %c0_i32_77] : memref<256x128xf32, #tpu.memory_space<any>> -> memref<1x128xf32, #tpu.memory_space<any>>
      %122 = tpu.memref_squeeze %121 : memref<1x128xf32, #tpu.memory_space<any>> -> memref<128xf32, #tpu.memory_space<any>>
      %c0_i32_78 = arith.constant 0 : i32
      %123 = tpu.memref_slice %arg4[%80, %c4_i32_75, %c0_i32_78] : memref<2x8x128xf32, #tpu.memory_space<vmem>> -> memref<1x1x128xf32, #tpu.memory_space<vmem>>
      %124 = tpu.memref_squeeze %123 : memref<1x1x128xf32, #tpu.memory_space<vmem>> -> memref<128xf32, #tpu.memory_space<vmem>>
      %125 = tpu.memref_slice %arg5[%80, %c4_i32_76] : memref<2x8x!tpu.dma_semaphore, #tpu.memory_space<semaphore_mem>> -> memref<1x1x!tpu.dma_semaphore, #tpu.memory_space<semaphore_mem>>
      %126 = tpu.memref_squeeze %125 : memref<1x1x!tpu.dma_semaphore, #tpu.memory_space<semaphore_mem>> -> memref<!tpu.dma_semaphore, #tpu.memory_space<semaphore_mem>>
      tpu.enqueue_dma source(%122 : memref<128xf32, #tpu.memory_space<any>>) target(%124 : memref<128xf32, #tpu.memory_space<vmem>>) target_semaphore(%126 : memref<!tpu.dma_semaphore, #tpu.memory_space<semaphore_mem>>)
      %c5_i32_79 = arith.constant 5 : i32
      %127 = arith.addi %81, %c5_i32_79 : i32
      %128 = arith.index_cast %127 : i32 to index
      %129 = memref.load %arg1[%128] : memref<16xi32, #tpu.memory_space<smem>>
      %c5_i32_80 = arith.constant 5 : i32
      %c5_i32_81 = arith.constant 5 : i32
      %c0_i32_82 = arith.constant 0 : i32
      %130 = tpu.memref_slice %arg2[%129, %c0_i32_82] : memref<256x128xf32, #tpu.memory_space<any>> -> memref<1x128xf32, #tpu.memory_space<any>>
      %131 = tpu.memref_squeeze %130 : memref<1x128xf32, #tpu.memory_space<any>> -> memref<128xf32, #tpu.memory_space<any>>
      %c0_i32_83 = arith.constant 0 : i32
      %132 = tpu.memref_slice %arg4[%80, %c5_i32_80, %c0_i32_83] : memref<2x8x128xf32, #tpu.memory_space<vmem>> -> memref<1x1x128xf32, #tpu.memory_space<vmem>>
      %133 = tpu.memref_squeeze %132 : memref<1x1x128xf32, #tpu.memory_space<vmem>> -> memref<128xf32, #tpu.memory_space<vmem>>
      %134 = tpu.memref_slice %arg5[%80, %c5_i32_81] : memref<2x8x!tpu.dma_semaphore, #tpu.memory_space<semaphore_mem>> -> memref<1x1x!tpu.dma_semaphore, #tpu.memory_space<semaphore_mem>>
      %135 = tpu.memref_squeeze %134 : memref<1x1x!tpu.dma_semaphore, #tpu.memory_space<semaphore_mem>> -> memref<!tpu.dma_semaphore, #tpu.memory_space<semaphore_mem>>
      tpu.enqueue_dma source(%131 : memref<128xf32, #tpu.memory_space<any>>) target(%133 : memref<128xf32, #tpu.memory_space<vmem>>) target_semaphore(%135 : memref<!tpu.dma_semaphore, #tpu.memory_space<semaphore_mem>>)
      %c6_i32_84 = arith.constant 6 : i32
      %136 = arith.addi %81, %c6_i32_84 : i32
      %137 = arith.index_cast %136 : i32 to index
      %138 = memref.load %arg1[%137] : memref<16xi32, #tpu.memory_space<smem>>
      %c6_i32_85 = arith.constant 6 : i32
      %c6_i32_86 = arith.constant 6 : i32
      %c0_i32_87 = arith.constant 0 : i32
      %139 = tpu.memref_slice %arg2[%138, %c0_i32_87] : memref<256x128xf32, #tpu.memory_space<any>> -> memref<1x128xf32, #tpu.memory_space<any>>
      %140 = tpu.memref_squeeze %139 : memref<1x128xf32, #tpu.memory_space<any>> -> memref<128xf32, #tpu.memory_space<any>>
      %c0_i32_88 = arith.constant 0 : i32
      %141 = tpu.memref_slice %arg4[%80, %c6_i32_85, %c0_i32_88] : memref<2x8x128xf32, #tpu.memory_space<vmem>> -> memref<1x1x128xf32, #tpu.memory_space<vmem>>
      %142 = tpu.memref_squeeze %141 : memref<1x1x128xf32, #tpu.memory_space<vmem>> -> memref<128xf32, #tpu.memory_space<vmem>>
      %143 = tpu.memref_slice %arg5[%80, %c6_i32_86] : memref<2x8x!tpu.dma_semaphore, #tpu.memory_space<semaphore_mem>> -> memref<1x1x!tpu.dma_semaphore, #tpu.memory_space<semaphore_mem>>
      %144 = tpu.memref_squeeze %143 : memref<1x1x!tpu.dma_semaphore, #tpu.memory_space<semaphore_mem>> -> memref<!tpu.dma_semaphore, #tpu.memory_space<semaphore_mem>>
      tpu.enqueue_dma source(%140 : memref<128xf32, #tpu.memory_space<any>>) target(%142 : memref<128xf32, #tpu.memory_space<vmem>>) target_semaphore(%144 : memref<!tpu.dma_semaphore, #tpu.memory_space<semaphore_mem>>)
      %c7_i32_89 = arith.constant 7 : i32
      %145 = arith.addi %81, %c7_i32_89 : i32
      %146 = arith.index_cast %145 : i32 to index
      %147 = memref.load %arg1[%146] : memref<16xi32, #tpu.memory_space<smem>>
      %c7_i32_90 = arith.constant 7 : i32
      %c7_i32_91 = arith.constant 7 : i32
      %c0_i32_92 = arith.constant 0 : i32
      %148 = tpu.memref_slice %arg2[%147, %c0_i32_92] : memref<256x128xf32, #tpu.memory_space<any>> -> memref<1x128xf32, #tpu.memory_space<any>>
      %149 = tpu.memref_squeeze %148 : memref<1x128xf32, #tpu.memory_space<any>> -> memref<128xf32, #tpu.memory_space<any>>
      %c0_i32_93 = arith.constant 0 : i32
      %150 = tpu.memref_slice %arg4[%80, %c7_i32_90, %c0_i32_93] : memref<2x8x128xf32, #tpu.memory_space<vmem>> -> memref<1x1x128xf32, #tpu.memory_space<vmem>>
      %151 = tpu.memref_squeeze %150 : memref<1x1x128xf32, #tpu.memory_space<vmem>> -> memref<128xf32, #tpu.memory_space<vmem>>
      %152 = tpu.memref_slice %arg5[%80, %c7_i32_91] : memref<2x8x!tpu.dma_semaphore, #tpu.memory_space<semaphore_mem>> -> memref<1x1x!tpu.dma_semaphore, #tpu.memory_space<semaphore_mem>>
      %153 = tpu.memref_squeeze %152 : memref<1x1x!tpu.dma_semaphore, #tpu.memory_space<semaphore_mem>> -> memref<!tpu.dma_semaphore, #tpu.memory_space<semaphore_mem>>
      tpu.enqueue_dma source(%149 : memref<128xf32, #tpu.memory_space<any>>) target(%151 : memref<128xf32, #tpu.memory_space<vmem>>) target_semaphore(%153 : memref<!tpu.dma_semaphore, #tpu.memory_space<semaphore_mem>>)
    } else {
    }
    %c2_i32_2 = arith.constant 2 : i32
    %c0_i32_3 = arith.constant 0 : i32
    %7 = arith.cmpi eq, %c2_i32_2, %c0_i32_3 : i32
    %c1_i32_4 = arith.constant 1 : i32
    %8 = arith.select %7, %c1_i32_4, %c2_i32_2 : i32
    %9 = arith.remsi %arg0, %8 : i32
    %c0_i32_5 = arith.constant 0 : i32
    %10 = arith.cmpi ne, %9, %c0_i32_5 : i32
    %c0_i32_6 = arith.constant 0 : i32
    %11 = arith.cmpi slt, %9, %c0_i32_6 : i32
    %c0_i32_7 = arith.constant 0 : i32
    %12 = arith.cmpi slt, %8, %c0_i32_7 : i32
    %13 = arith.xori %11, %12 : i1
    %14 = arith.andi %13, %10 : i1
    %15 = arith.addi %9, %8 : i32
    %16 = arith.select %14, %15, %9 : i32
    %c0_i32_8 = arith.constant 0 : i32
    %c0_i32_9 = arith.constant 0 : i32
    %c0_i32_10 = arith.constant 0 : i32
    %c0_i32_11 = arith.constant 0 : i32
    %17 = tpu.memref_slice %arg2[%c0_i32_8, %c0_i32_11] : memref<256x128xf32, #tpu.memory_space<any>> -> memref<1x128xf32, #tpu.memory_space<any>>
    %18 = tpu.memref_squeeze %17 : memref<1x128xf32, #tpu.memory_space<any>> -> memref<128xf32, #tpu.memory_space<any>>
    %c0_i32_12 = arith.constant 0 : i32
    %19 = tpu.memref_slice %arg4[%16, %c0_i32_9, %c0_i32_12] : memref<2x8x128xf32, #tpu.memory_space<vmem>> -> memref<1x1x128xf32, #tpu.memory_space<vmem>>
    %20 = tpu.memref_squeeze %19 : memref<1x1x128xf32, #tpu.memory_space<vmem>> -> memref<128xf32, #tpu.memory_space<vmem>>
    %21 = tpu.memref_slice %arg5[%16, %c0_i32_10] : memref<2x8x!tpu.dma_semaphore, #tpu.memory_space<semaphore_mem>> -> memref<1x1x!tpu.dma_semaphore, #tpu.memory_space<semaphore_mem>>
    %22 = tpu.memref_squeeze %21 : memref<1x1x!tpu.dma_semaphore, #tpu.memory_space<semaphore_mem>> -> memref<!tpu.dma_semaphore, #tpu.memory_space<semaphore_mem>>
    tpu.wait_dma2 semaphore(%22 : memref<!tpu.dma_semaphore, #tpu.memory_space<semaphore_mem>>) src(%18 : memref<128xf32, #tpu.memory_space<any>>) dst(%20 : memref<128xf32, #tpu.memory_space<vmem>>)
    %c0_i32_13 = arith.constant 0 : i32
    %c1_i32_14 = arith.constant 1 : i32
    %c1_i32_15 = arith.constant 1 : i32
    %c0_i32_16 = arith.constant 0 : i32
    %23 = tpu.memref_slice %arg2[%c0_i32_13, %c0_i32_16] : memref<256x128xf32, #tpu.memory_space<any>> -> memref<1x128xf32, #tpu.memory_space<any>>
    %24 = tpu.memref_squeeze %23 : memref<1x128xf32, #tpu.memory_space<any>> -> memref<128xf32, #tpu.memory_space<any>>
    %c0_i32_17 = arith.constant 0 : i32
    %25 = tpu.memref_slice %arg4[%16, %c1_i32_14, %c0_i32_17] : memref<2x8x128xf32, #tpu.memory_space<vmem>> -> memref<1x1x128xf32, #tpu.memory_space<vmem>>
    %26 = tpu.memref_squeeze %25 : memref<1x1x128xf32, #tpu.memory_space<vmem>> -> memref<128xf32, #tpu.memory_space<vmem>>
    %27 = tpu.memref_slice %arg5[%16, %c1_i32_15] : memref<2x8x!tpu.dma_semaphore, #tpu.memory_space<semaphore_mem>> -> memref<1x1x!tpu.dma_semaphore, #tpu.memory_space<semaphore_mem>>
    %28 = tpu.memref_squeeze %27 : memref<1x1x!tpu.dma_semaphore, #tpu.memory_space<semaphore_mem>> -> memref<!tpu.dma_semaphore, #tpu.memory_space<semaphore_mem>>
    tpu.wait_dma2 semaphore(%28 : memref<!tpu.dma_semaphore, #tpu.memory_space<semaphore_mem>>) src(%24 : memref<128xf32, #tpu.memory_space<any>>) dst(%26 : memref<128xf32, #tpu.memory_space<vmem>>)
    %c0_i32_18 = arith.constant 0 : i32
    %c2_i32_19 = arith.constant 2 : i32
    %c2_i32_20 = arith.constant 2 : i32
    %c0_i32_21 = arith.constant 0 : i32
    %29 = tpu.memref_slice %arg2[%c0_i32_18, %c0_i32_21] : memref<256x128xf32, #tpu.memory_space<any>> -> memref<1x128xf32, #tpu.memory_space<any>>
    %30 = tpu.memref_squeeze %29 : memref<1x128xf32, #tpu.memory_space<any>> -> memref<128xf32, #tpu.memory_space<any>>
    %c0_i32_22 = arith.constant 0 : i32
    %31 = tpu.memref_slice %arg4[%16, %c2_i32_19, %c0_i32_22] : memref<2x8x128xf32, #tpu.memory_space<vmem>> -> memref<1x1x128xf32, #tpu.memory_space<vmem>>
    %32 = tpu.memref_squeeze %31 : memref<1x1x128xf32, #tpu.memory_space<vmem>> -> memref<128xf32, #tpu.memory_space<vmem>>
    %33 = tpu.memref_slice %arg5[%16, %c2_i32_20] : memref<2x8x!tpu.dma_semaphore, #tpu.memory_space<semaphore_mem>> -> memref<1x1x!tpu.dma_semaphore, #tpu.memory_space<semaphore_mem>>
    %34 = tpu.memref_squeeze %33 : memref<1x1x!tpu.dma_semaphore, #tpu.memory_space<semaphore_mem>> -> memref<!tpu.dma_semaphore, #tpu.memory_space<semaphore_mem>>
    tpu.wait_dma2 semaphore(%34 : memref<!tpu.dma_semaphore, #tpu.memory_space<semaphore_mem>>) src(%30 : memref<128xf32, #tpu.memory_space<any>>) dst(%32 : memref<128xf32, #tpu.memory_space<vmem>>)
    %c0_i32_23 = arith.constant 0 : i32
    %c3_i32 = arith.constant 3 : i32
    %c3_i32_24 = arith.constant 3 : i32
    %c0_i32_25 = arith.constant 0 : i32
    %35 = tpu.memref_slice %arg2[%c0_i32_23, %c0_i32_25] : memref<256x128xf32, #tpu.memory_space<any>> -> memref<1x128xf32, #tpu.memory_space<any>>
    %36 = tpu.memref_squeeze %35 : memref<1x128xf32, #tpu.memory_space<any>> -> memref<128xf32, #tpu.memory_space<any>>
    %c0_i32_26 = arith.constant 0 : i32
    %37 = tpu.memref_slice %arg4[%16, %c3_i32, %c0_i32_26] : memref<2x8x128xf32, #tpu.memory_space<vmem>> -> memref<1x1x128xf32, #tpu.memory_space<vmem>>
    %38 = tpu.memref_squeeze %37 : memref<1x1x128xf32, #tpu.memory_space<vmem>> -> memref<128xf32, #tpu.memory_space<vmem>>
    %39 = tpu.memref_slice %arg5[%16, %c3_i32_24] : memref<2x8x!tpu.dma_semaphore, #tpu.memory_space<semaphore_mem>> -> memref<1x1x!tpu.dma_semaphore, #tpu.memory_space<semaphore_mem>>
    %40 = tpu.memref_squeeze %39 : memref<1x1x!tpu.dma_semaphore, #tpu.memory_space<semaphore_mem>> -> memref<!tpu.dma_semaphore, #tpu.memory_space<semaphore_mem>>
    tpu.wait_dma2 semaphore(%40 : memref<!tpu.dma_semaphore, #tpu.memory_space<semaphore_mem>>) src(%36 : memref<128xf32, #tpu.memory_space<any>>) dst(%38 : memref<128xf32, #tpu.memory_space<vmem>>)
    %c0_i32_27 = arith.constant 0 : i32
    %c4_i32 = arith.constant 4 : i32
    %c4_i32_28 = arith.constant 4 : i32
    %c0_i32_29 = arith.constant 0 : i32
    %41 = tpu.memref_slice %arg2[%c0_i32_27, %c0_i32_29] : memref<256x128xf32, #tpu.memory_space<any>> -> memref<1x128xf32, #tpu.memory_space<any>>
    %42 = tpu.memref_squeeze %41 : memref<1x128xf32, #tpu.memory_space<any>> -> memref<128xf32, #tpu.memory_space<any>>
    %c0_i32_30 = arith.constant 0 : i32
    %43 = tpu.memref_slice %arg4[%16, %c4_i32, %c0_i32_30] : memref<2x8x128xf32, #tpu.memory_space<vmem>> -> memref<1x1x128xf32, #tpu.memory_space<vmem>>
    %44 = tpu.memref_squeeze %43 : memref<1x1x128xf32, #tpu.memory_space<vmem>> -> memref<128xf32, #tpu.memory_space<vmem>>
    %45 = tpu.memref_slice %arg5[%16, %c4_i32_28] : memref<2x8x!tpu.dma_semaphore, #tpu.memory_space<semaphore_mem>> -> memref<1x1x!tpu.dma_semaphore, #tpu.memory_space<semaphore_mem>>
    %46 = tpu.memref_squeeze %45 : memref<1x1x!tpu.dma_semaphore, #tpu.memory_space<semaphore_mem>> -> memref<!tpu.dma_semaphore, #tpu.memory_space<semaphore_mem>>
    tpu.wait_dma2 semaphore(%46 : memref<!tpu.dma_semaphore, #tpu.memory_space<semaphore_mem>>) src(%42 : memref<128xf32, #tpu.memory_space<any>>) dst(%44 : memref<128xf32, #tpu.memory_space<vmem>>)
    %c0_i32_31 = arith.constant 0 : i32
    %c5_i32 = arith.constant 5 : i32
    %c5_i32_32 = arith.constant 5 : i32
    %c0_i32_33 = arith.constant 0 : i32
    %47 = tpu.memref_slice %arg2[%c0_i32_31, %c0_i32_33] : memref<256x128xf32, #tpu.memory_space<any>> -> memref<1x128xf32, #tpu.memory_space<any>>
    %48 = tpu.memref_squeeze %47 : memref<1x128xf32, #tpu.memory_space<any>> -> memref<128xf32, #tpu.memory_space<any>>
    %c0_i32_34 = arith.constant 0 : i32
    %49 = tpu.memref_slice %arg4[%16, %c5_i32, %c0_i32_34] : memref<2x8x128xf32, #tpu.memory_space<vmem>> -> memref<1x1x128xf32, #tpu.memory_space<vmem>>
    %50 = tpu.memref_squeeze %49 : memref<1x1x128xf32, #tpu.memory_space<vmem>> -> memref<128xf32, #tpu.memory_space<vmem>>
    %51 = tpu.memref_slice %arg5[%16, %c5_i32_32] : memref<2x8x!tpu.dma_semaphore, #tpu.memory_space<semaphore_mem>> -> memref<1x1x!tpu.dma_semaphore, #tpu.memory_space<semaphore_mem>>
    %52 = tpu.memref_squeeze %51 : memref<1x1x!tpu.dma_semaphore, #tpu.memory_space<semaphore_mem>> -> memref<!tpu.dma_semaphore, #tpu.memory_space<semaphore_mem>>
    tpu.wait_dma2 semaphore(%52 : memref<!tpu.dma_semaphore, #tpu.memory_space<semaphore_mem>>) src(%48 : memref<128xf32, #tpu.memory_space<any>>) dst(%50 : memref<128xf32, #tpu.memory_space<vmem>>)
    %c0_i32_35 = arith.constant 0 : i32
    %c6_i32 = arith.constant 6 : i32
    %c6_i32_36 = arith.constant 6 : i32
    %c0_i32_37 = arith.constant 0 : i32
    %53 = tpu.memref_slice %arg2[%c0_i32_35, %c0_i32_37] : memref<256x128xf32, #tpu.memory_space<any>> -> memref<1x128xf32, #tpu.memory_space<any>>
    %54 = tpu.memref_squeeze %53 : memref<1x128xf32, #tpu.memory_space<any>> -> memref<128xf32, #tpu.memory_space<any>>
    %c0_i32_38 = arith.constant 0 : i32
    %55 = tpu.memref_slice %arg4[%16, %c6_i32, %c0_i32_38] : memref<2x8x128xf32, #tpu.memory_space<vmem>> -> memref<1x1x128xf32, #tpu.memory_space<vmem>>
    %56 = tpu.memref_squeeze %55 : memref<1x1x128xf32, #tpu.memory_space<vmem>> -> memref<128xf32, #tpu.memory_space<vmem>>
    %57 = tpu.memref_slice %arg5[%16, %c6_i32_36] : memref<2x8x!tpu.dma_semaphore, #tpu.memory_space<semaphore_mem>> -> memref<1x1x!tpu.dma_semaphore, #tpu.memory_space<semaphore_mem>>
    %58 = tpu.memref_squeeze %57 : memref<1x1x!tpu.dma_semaphore, #tpu.memory_space<semaphore_mem>> -> memref<!tpu.dma_semaphore, #tpu.memory_space<semaphore_mem>>
    tpu.wait_dma2 semaphore(%58 : memref<!tpu.dma_semaphore, #tpu.memory_space<semaphore_mem>>) src(%54 : memref<128xf32, #tpu.memory_space<any>>) dst(%56 : memref<128xf32, #tpu.memory_space<vmem>>)
    %c0_i32_39 = arith.constant 0 : i32
    %c7_i32 = arith.constant 7 : i32
    %c7_i32_40 = arith.constant 7 : i32
    %c0_i32_41 = arith.constant 0 : i32
    %59 = tpu.memref_slice %arg2[%c0_i32_39, %c0_i32_41] : memref<256x128xf32, #tpu.memory_space<any>> -> memref<1x128xf32, #tpu.memory_space<any>>
    %60 = tpu.memref_squeeze %59 : memref<1x128xf32, #tpu.memory_space<any>> -> memref<128xf32, #tpu.memory_space<any>>
    %c0_i32_42 = arith.constant 0 : i32
    %61 = tpu.memref_slice %arg4[%16, %c7_i32, %c0_i32_42] : memref<2x8x128xf32, #tpu.memory_space<vmem>> -> memref<1x1x128xf32, #tpu.memory_space<vmem>>
    %62 = tpu.memref_squeeze %61 : memref<1x1x128xf32, #tpu.memory_space<vmem>> -> memref<128xf32, #tpu.memory_space<vmem>>
    %63 = tpu.memref_slice %arg5[%16, %c7_i32_40] : memref<2x8x!tpu.dma_semaphore, #tpu.memory_space<semaphore_mem>> -> memref<1x1x!tpu.dma_semaphore, #tpu.memory_space<semaphore_mem>>
    %64 = tpu.memref_squeeze %63 : memref<1x1x!tpu.dma_semaphore, #tpu.memory_space<semaphore_mem>> -> memref<!tpu.dma_semaphore, #tpu.memory_space<semaphore_mem>>
    tpu.wait_dma2 semaphore(%64 : memref<!tpu.dma_semaphore, #tpu.memory_space<semaphore_mem>>) src(%60 : memref<128xf32, #tpu.memory_space<any>>) dst(%62 : memref<128xf32, #tpu.memory_space<vmem>>)
    %65 = arith.index_cast %16 : i32 to index
    %c0 = arith.constant 0 : index
    %c0_43 = arith.constant 0 : index
    %66 = vector.load %arg4[%65, %c0, %c0_43] : memref<2x8x128xf32, #tpu.memory_space<vmem>>, vector<1x8x128xf32>
    %67 = vector.shape_cast %66 : vector<1x8x128xf32> to vector<8x128xf32>
    %c0_44 = arith.constant 0 : index
    %c0_45 = arith.constant 0 : index
    %68 = vector.load %arg3[%c0_44, %c0_45] : memref<8x128xf32, #tpu.memory_space<vmem>>, vector<8x128xf32>
    tpu.vector_store %arg3[%c0_44, %c0_45], %67 {strides = array<i32>} : memref<8x128xf32, #tpu.memory_space<vmem>>, vector<8x128xf32>,
    return
  }
  func.func @transform_1(%arg0: i32, %arg1: memref<16xi32, #tpu.memory_space<smem>>) -> (i32, i32) {
    %c0_i32 = arith.constant 0 : i32
    %c0_i32_0 = arith.constant 0 : i32
    return %arg0, %c0_i32 : i32, i32
  }
}

</mosaic_0001>

<llo_original>
// kernel: tpu_custom_call.1
$region0: #{tpu_custom_call.1}
  #allocation0 [shape = 'u32[]', space=smem, size = 0x4, offset = 0x4, fixed_abs, tag = 'smem constant byte address 0x4 - core index']
  #allocation1 [shape = 'u32[144,128]{1,0:T(1,128)}', space=vmem, size = 0x12000, scoped, tag = 'internal scratch']
  #allocation2 [shape = 'f32[2,8,128]{2,1,0:T(8,128)}', space=vmem, size = 0x2000, scoped, tag = 'scratch operand']
  #allocation3 [shape = 's32[16]{0}', space=sflag, size = 0x40, scoped, tag = 'scratch operand']
  #allocation4 [shape = 's32[1]{0}', space=sflag, size = 0x4, scoped, tag = 'scoped memory for tpu_custom_call.1']
  #allocation5 [shape = 'u8[512]{0}', space=smem, size = 0x200, scoped, tag = 'prefetched SMEM operand 0']
  #allocation8 [shape = 's32[]', space=sflag, size = 0x4, offset = 0, fixed_abs, tag = 'sflag constant byte address 0x0 - dummy sync flag']
  #allocation9 [shape = 's32[]', space=sflag, size = 0x4, offset = 0, fixed_abs, tag = 'sflag constant byte address 0x0 - dummy sync flag']
  #allocation10 [shape = 'u32[]', space=smem, size = 0x4, offset = 0x44, fixed_abs, tag = 'smem constant byte address 0x44 - assertion arg 0']
  #allocation11 [shape = 'u32[]', space=smem, size = 0x4, offset = 0x48, fixed_abs, tag = 'smem constant byte address 0x48 - assertion arg 1']
  #allocation12 [shape = 's32[]', space=sflag, size = 0x4, offset = 0, fixed_abs, tag = 'sflag constant byte address 0x0 - dummy sync flag']
  #allocation13 [shape = 's32[]', space=sflag, size = 0x4, offset = 0, fixed_abs, tag = 'sflag constant byte address 0x0 - dummy sync flag']
  #allocation14 [shape = 's32[]', space=sflag, size = 0x4, offset = 0, fixed_abs, tag = 'sflag constant byte address 0x0 - dummy sync flag']
  #allocation15 [shape = 's32[]', space=sflag, size = 0x4, offset = 0, fixed_abs, tag = 'sflag constant byte address 0x0 - dummy sync flag']
  #allocation16 [shape = 's32[]', space=sflag, size = 0x4, offset = 0, fixed_abs, tag = 'sflag constant byte address 0x0 - dummy sync flag']
  #allocation17 [shape = 's32[]', space=sflag, size = 0x4, offset = 0, fixed_abs, tag = 'sflag constant byte address 0x0 - dummy sync flag']
  #allocation18 [shape = 's32[]', space=sflag, size = 0x4, offset = 0, fixed_abs, tag = 'sflag constant byte address 0x0 - dummy sync flag']
  #allocation19 [shape = 's32[]', space=sflag, size = 0x4, offset = 0, fixed_abs, tag = 'sflag constant byte address 0x0 - dummy sync flag']
  #allocation20 [shape = 's32[]', space=sflag, size = 0x4, offset = 0, fixed_abs, tag = 'sflag constant byte address 0x0 - dummy sync flag']
  #allocation21 [shape = 's32[]', space=sflag, size = 0x4, offset = 0, fixed_abs, tag = 'sflag constant byte address 0x0 - dummy sync flag']
  #allocation22 [shape = 's32[]', space=sflag, size = 0x4, offset = 0, fixed_abs, tag = 'sflag constant byte address 0x0 - dummy sync flag']
  #allocation23 [shape = 's32[]', space=sflag, size = 0x4, offset = 0, fixed_abs, tag = 'sflag constant byte address 0x0 - dummy sync flag']
  #allocation24 [shape = 's32[]', space=sflag, size = 0x4, offset = 0, fixed_abs, tag = 'sflag constant byte address 0x0 - dummy sync flag']
  #allocation25 [shape = 's32[]', space=sflag, size = 0x4, offset = 0, fixed_abs, tag = 'sflag constant byte address 0x0 - dummy sync flag']
  #allocation26 [shape = 's32[]', space=sflag, size = 0x4, offset = 0, fixed_abs, tag = 'sflag constant byte address 0x0 - dummy sync flag']
  #allocation27 [shape = 's32[]', space=sflag, size = 0x4, offset = 0, fixed_abs, tag = 'sflag constant byte address 0x0 - dummy sync flag']
  #allocation28 [shape = 's32[]', space=sflag, size = 0x4, offset = 0, fixed_abs, tag = 'sflag constant byte address 0x0 - dummy sync flag']
  #allocation29 [shape = 's32[]', space=sflag, size = 0x4, offset = 0, fixed_abs, tag = 'sflag constant byte address 0x0 - dummy sync flag']
  #allocation30 [shape = 's32[]', space=sflag, size = 0x4, offset = 0, fixed_abs, tag = 'sflag constant byte address 0x0 - dummy sync flag']
  #allocation31 [shape = 's32[]', space=sflag, size = 0x4, offset = 0, fixed_abs, tag = 'sflag constant byte address 0x0 - dummy sync flag']
  #allocation32 [shape = 's32[]', space=sflag, size = 0x4, offset = 0, fixed_abs, tag = 'sflag constant byte address 0x0 - dummy sync flag']
  #allocation33 [shape = 's32[]', space=sflag, size = 0x4, offset = 0, fixed_abs, tag = 'sflag constant byte address 0x0 - dummy sync flag']
  #allocation34 [shape = 's32[]', space=sflag, size = 0x4, offset = 0, fixed_abs, tag = 'sflag constant byte address 0x0 - dummy sync flag']
  #allocation35 [shape = 's32[]', space=sflag, size = 0x4, offset = 0, fixed_abs, tag = 'sflag constant byte address 0x0 - dummy sync flag']
  #allocation36 [shape = 's32[]', space=sflag, size = 0x4, offset = 0, fixed_abs, tag = 'sflag constant byte address 0x0 - dummy sync flag']
  #allocation37 [shape = 's32[]', space=sflag, size = 0x4, offset = 0, fixed_abs, tag = 'sflag constant byte address 0x0 - dummy sync flag']
  #allocation38 [shape = 's32[]', space=sflag, size = 0x4, offset = 0, fixed_abs, tag = 'sflag constant byte address 0x0 - dummy sync flag']
  #allocation39 [shape = 's32[]', space=sflag, size = 0x4, offset = 0, fixed_abs, tag = 'sflag constant byte address 0x0 - dummy sync flag']
  #allocation40 [shape = 's32[]', space=sflag, size = 0x4, offset = 0, fixed_abs, tag = 'sflag constant byte address 0x0 - dummy sync flag']
  #allocation41 [shape = 's32[]', space=sflag, size = 0x4, offset = 0, fixed_abs, tag = 'sflag constant byte address 0x0 - dummy sync flag']
  %s0 = inlined_call_operand.hbm [shape: s32[16], index: 0, kind: input, shape index: {}]
  %s1 = inlined_call_operand.hbm [shape: f32[256,128], index: 1, kind: input, shape index: {}]
  %s2 = inlined_call_operand.hbm [shape: f32[16,128], index: 2, kind: output, shape index: {}]
  %s3 = sld [smem:[#allocation0]]
  $region97: #{tpu_custom_call.1} parent=0
    _
  %s5 = ssub.s32 1, %s3
  %s6 = scalar_select 0, %s5, %s3
  %8 = dma.hbm_to_smem %s0, 16, [#allocation5], [#allocation4]
  %9 = dma.done [#allocation4], 16
  %10 = sfence
  $region1: #{tpu_custom_call.1} parent=0
    #allocation6 [shape = 'u8[8192]{0}', space=vmem, size = 0x2000, scoped, tag = 'output window, operand 0']
    #allocation7 [shape = 's32[2]{0}', space=sflag, size = 0x8, scoped, tag = 'scoped memory for tpu_custom_call.1']
    %11 = vsyncpa [#allocation7], 0
    %s12 = scalar_lea.sflag [#allocation7], 1
    %13 = vsyncpa %s12, 0
    loop: start=0, step=1, limit=3
    $region2: #{tpu_custom_call.1} parent=1 // loop_pre_header
      _
    $region3: #{tpu_custom_call.1} parent=1 // loop_header
      %s15 = sphi 0, %s19
      %p16 = scmp.ge.s32.totalorder %s15, 3
      %s24 = sphi 0, %s26
      %s27 = sphi 0, %s24
      %s37 = sphi 0, %s27
    $region4: #{tpu_custom_call.1} parent=1 // loop_header_branch
      %18 = sbr.rel (%p16) target = $region8
    $region5: #{tpu_custom_call.1} parent=1 // loop_body
      %s20 = ssub.s32 %s15, 1
      %s21 = sadd.s32 %s15, 1
      %s22 = ssub.s32 %s15, %s21
      %p23 = scmp.eq.s32.totalorder %s22, 0
      %s25 = sadd.s32 %s24, 1
      %s26 = scalar_select %p23, %s24, %s25
      %p28 = pneg %p23
      %p29 = scmp.eq.s32.totalorder %s15, 1
      %p30 = por %p28, %p29
      %p31 = scmp.ne.s32.totalorder %s24, %s27
      %p32 = scmp.eq.s32.totalorder %s15, 0
      %p33 = por %p31, %p32
      %p34 = scmp.ne.s32.totalorder %s24, %s27
      %p35 = scmp.eq.s32.totalorder %s20, 1
      %p36 = por %p34, %p35
      %p38 = scmp.ne.s32.totalorder %s27, %s37
      %p39 = scmp.eq.s32.totalorder %s20, 0
      %p40 = por %p38, %p39
      %p41 = scmp.lt.s32.totalorder %s15, 2
      // Predicated region
      $region9: #{tpu_custom_call.1} parent=5 // pred_check
        %p42 = pneg %p41
      $region10: #{tpu_custom_call.1} parent=5 // pred_check_branch
        %44 = sbr.rel (%p42) target = $region12
      $region11: #{tpu_custom_call.1} parent=5 // pred_region
        %p45 = pneg %p33
        %p46 = pneg %p30
        %s47 = sand.u32 %s24, 1
        %s48 = scalar_lea.sflag [#allocation7], %s47
        %s49 = sand.u32 %s24, 1
        %s50 = smul.addr %s49, 8
        %s51 = scalar_lea.vmem [#allocation6], %s50
        %p52 = scmp.eq.s32.totalorder %s15, 0
        // Predicated region
        $region13: #{tpu_custom_call.1} parent=11 // pred_check
          %p53 = pneg %p52
        $region14: #{tpu_custom_call.1} parent=11 // pred_check_branch
          %55 = sbr.rel (%p53) target = $region16
        $region15: #{tpu_custom_call.1} parent=11 // pred_region
          %s56 = sld [smem:[#allocation5]]
          %s57 = smul.addr %s56, 16
          %s58 = scalar_lea.hbm %s1, %s57
          // Predicated region
          $region17: #{tpu_custom_call.1} parent=15 // pred_check
            _
          $region18: #{tpu_custom_call.1} parent=15 // pred_check_branch
            %60 = sbr.rel target = $region20
          $region19: #{tpu_custom_call.1} parent=15 // pred_region
            %61 = sst [smem:[#allocation10]] [#allocation9]
            %62 = sst [smem:[#allocation11]] [#allocation8]
          $region20: #{tpu_custom_call.1} parent=15 // pred_fallthru
            _
          %64 = shalt.err (0)
          %s66 = sshll.u32 [#allocation2], 4
          %s67 = int_to_ptr.vmem [resolvable:$true] %s66
          %69 = dma.hbm_to_vmem [thread:$0]  %s58, 16, %s67, [#allocation3]
          %s70 = sld [smem:[#allocation5 + $0x1]]
          %s71 = smul.addr %s70, 16
          %s72 = scalar_lea.hbm %s1, %s71
          %s73 = scalar_lea.vmem [#allocation2], 1
          %s74 = scalar_lea.sflag [#allocation3], 1
          // Predicated region
          $region21: #{tpu_custom_call.1} parent=15 // pred_check
            _
          $region22: #{tpu_custom_call.1} parent=15 // pred_check_branch
            %76 = sbr.rel target = $region24
          $region23: #{tpu_custom_call.1} parent=15 // pred_region
            %77 = sst [smem:[#allocation10]] [#allocation13]
            %78 = sst [smem:[#allocation11]] [#allocation12]
          $region24: #{tpu_custom_call.1} parent=15 // pred_fallthru
            _
          %80 = shalt.err (0)
          %s82 = sshll.u32 %s73, 4
          %s83 = int_to_ptr.vmem [resolvable:$true] %s82
          %85 = dma.hbm_to_vmem [thread:$0]  %s72, 16, %s83, %s74
          %s86 = sld [smem:[#allocation5 + $0x2]]
          %s87 = smul.addr %s86, 16
          %s88 = scalar_lea.hbm %s1, %s87
          %s89 = scalar_lea.vmem [#allocation2], 2
          %s90 = scalar_lea.sflag [#allocation3], 2
          // Predicated region
          $region25: #{tpu_custom_call.1} parent=15 // pred_check
            _
          $region26: #{tpu_custom_call.1} parent=15 // pred_check_branch
            %92 = sbr.rel target = $region28
          $region27: #{tpu_custom_call.1} parent=15 // pred_region
            %93 = sst [smem:[#allocation10]] [#allocation15]
            %94 = sst [smem:[#allocation11]] [#allocation14]
          $region28: #{tpu_custom_call.1} parent=15 // pred_fallthru
            _
          %96 = shalt.err (0)
          %s98 = sshll.u32 %s89, 4
          %s99 = int_to_ptr.vmem [resolvable:$true] %s98
          %101 = dma.hbm_to_vmem [thread:$0]  %s88, 16, %s99, %s90
          %s102 = sld [smem:[#allocation5 + $0x3]]
          %s103 = smul.addr %s102, 16
          %s104 = scalar_lea.hbm %s1, %s103
          %s105 = scalar_lea.vmem [#allocation2], 3
          %s106 = scalar_lea.sflag [#allocation3], 3
          // Predicated region
          $region29: #{tpu_custom_call.1} parent=15 // pred_check
            _
          $region30: #{tpu_custom_call.1} parent=15 // pred_check_branch
            %108 = sbr.rel target = $region32
          $region31: #{tpu_custom_call.1} parent=15 // pred_region
            %109 = sst [smem:[#allocation10]] [#allocation17]
            %110 = sst [smem:[#allocation11]] [#allocation16]
          $region32: #{tpu_custom_call.1} parent=15 // pred_fallthru
            _
          %112 = shalt.err (0)
          %s114 = sshll.u32 %s105, 4
          %s115 = int_to_ptr.vmem [resolvable:$true] %s114
          %117 = dma.hbm_to_vmem [thread:$0]  %s104, 16, %s115, %s106
          %s118 = sld [smem:[#allocation5 + $0x4]]
          %s119 = smul.addr %s118, 16
          %s120 = scalar_lea.hbm %s1, %s119
          %s121 = scalar_lea.vmem [#allocation2], 4
          %s122 = scalar_lea.sflag [#allocation3], 4
          // Predicated region
          $region33: #{tpu_custom_call.1} parent=15 // pred_check
            _
          $region34: #{tpu_custom_call.1} parent=15 // pred_check_branch
            %124 = sbr.rel target = $region36
          $region35: #{tpu_custom_call.1} parent=15 // pred_region
            %125 = sst [smem:[#allocation10]] [#allocation19]
            %126 = sst [smem:[#allocation11]] [#allocation18]
          $region36: #{tpu_custom_call.1} parent=15 // pred_fallthru
            _
          %128 = shalt.err (0)
          %s130 = sshll.u32 %s121, 4
          %s131 = int_to_ptr.vmem [resolvable:$true] %s130
          %133 = dma.hbm_to_vmem [thread:$0]  %s120, 16, %s131, %s122
          %s134 = sld [smem:[#allocation5 + $0x5]]
          %s135 = smul.addr %s134, 16
          %s136 = scalar_lea.hbm %s1, %s135
          %s137 = scalar_lea.vmem [#allocation2], 5
          %s138 = scalar_lea.sflag [#allocation3], 5
          // Predicated region
          $region37: #{tpu_custom_call.1} parent=15 // pred_check
            _
          $region38: #{tpu_custom_call.1} parent=15 // pred_check_branch
            %140 = sbr.rel target = $region40
          $region39: #{tpu_custom_call.1} parent=15 // pred_region
            %141 = sst [smem:[#allocation10]] [#allocation21]
            %142 = sst [smem:[#allocation11]] [#allocation20]
          $region40: #{tpu_custom_call.1} parent=15 // pred_fallthru
            _
          %144 = shalt.err (0)
          %s146 = sshll.u32 %s137, 4
          %s147 = int_to_ptr.vmem [resolvable:$true] %s146
          %149 = dma.hbm_to_vmem [thread:$0]  %s136, 16, %s147, %s138
          %s150 = sld [smem:[#allocation5 + $0x6]]
          %s151 = smul.addr %s150, 16
          %s152 = scalar_lea.hbm %s1, %s151
          %s153 = scalar_lea.vmem [#allocation2], 6
          %s154 = scalar_lea.sflag [#allocation3], 6
          // Predicated region
          $region41: #{tpu_custom_call.1} parent=15 // pred_check
            _
          $region42: #{tpu_custom_call.1} parent=15 // pred_check_branch
            %156 = sbr.rel target = $region44
          $region43: #{tpu_custom_call.1} parent=15 // pred_region
            %157 = sst [smem:[#allocation10]] [#allocation23]
            %158 = sst [smem:[#allocation11]] [#allocation22]
          $region44: #{tpu_custom_call.1} parent=15 // pred_fallthru
            _
          %160 = shalt.err (0)
          %s162 = sshll.u32 %s153, 4
          %s163 = int_to_ptr.vmem [resolvable:$true] %s162
          %165 = dma.hbm_to_vmem [thread:$0]  %s152, 16, %s163, %s154
          %s166 = sld [smem:[#allocation5 + $0x7]]
          %s167 = smul.addr %s166, 16
          %s168 = scalar_lea.hbm %s1, %s167
          %s169 = scalar_lea.vmem [#allocation2], 7
          %s170 = scalar_lea.sflag [#allocation3], 7
          // Predicated region
          $region45: #{tpu_custom_call.1} parent=15 // pred_check
            _
          $region46: #{tpu_custom_call.1} parent=15 // pred_check_branch
            %172 = sbr.rel target = $region48
          $region47: #{tpu_custom_call.1} parent=15 // pred_region
            %173 = sst [smem:[#allocation10]] [#allocation25]
            %174 = sst [smem:[#allocation11]] [#allocation24]
          $region48: #{tpu_custom_call.1} parent=15 // pred_fallthru
            _
          %176 = shalt.err (0)
          %s178 = sshll.u32 %s169, 4
          %s179 = int_to_ptr.vmem [resolvable:$true] %s178
          %181 = dma.hbm_to_vmem [thread:$0]  %s168, 16, %s179, %s170
        $region16: #{tpu_custom_call.1} parent=11 // pred_fallthru
          _
        %s182 = sadd.s32 %s15, 1
        %p183 = scmp.lt.s32.totalorder %s182, 2
        // Predicated region
        $region49: #{tpu_custom_call.1} parent=11 // pred_check
          %p184 = pneg %p183
        $region50: #{tpu_custom_call.1} parent=11 // pred_check_branch
          %186 = sbr.rel (%p184) target = $region52
        $region51: #{tpu_custom_call.1} parent=11 // pred_region
          %p187 = scmp.lt.s32.totalorder %s182, 0
          %s188 = ssub.s32 0, %s182
          %s189 = scalar_select %p187, %s188, %s182
          %s190 = sand.u32 %s189, 1
          %s191 = ssub.s32 0, %s190
          %s192 = scalar_select %p187, %s191, %s190
          %p193 = scmp.ne.s32.totalorder %s192, 0
          %p194 = scmp.lt.s32.totalorder %s192, 0
          %p195 = pnand %p194, %p193
          %p196 = pneg %p195
          %s197 = sadd.s32 %s192, 2
          %s198 = scalar_select %p196, %s197, %s192
          %s199 = smul.u32 %s182, 8
          %s200 = sld [smem:[#allocation5 + %s199]]
          %s201 = smul.addr %s200, 16
          %s202 = scalar_lea.hbm %s1, %s201
          %s203 = smul.u32 %s198, 8
          %s204 = scalar_lea.vmem [#allocation2], %s203
          %s205 = scalar_lea.sflag [#allocation3], %s203
          // Predicated region
          $region53: #{tpu_custom_call.1} parent=51 // pred_check
            _
          $region54: #{tpu_custom_call.1} parent=51 // pred_check_branch
            %207 = sbr.rel target = $region56
          $region55: #{tpu_custom_call.1} parent=51 // pred_region
            %208 = sst [smem:[#allocation10]] [#allocation27]
            %209 = sst [smem:[#allocation11]] [#allocation26]
          $region56: #{tpu_custom_call.1} parent=51 // pred_fallthru
            _
          %211 = shalt.err (0)
          %s213 = sshll.u32 %s204, 4
          %s214 = int_to_ptr.vmem [resolvable:$true] %s213
          %216 = dma.hbm_to_vmem [thread:$0]  %s202, 16, %s214, %s205
          %s217 = sadd.s32 %s199, 1
          %s218 = sld [smem:[#allocation5 + %s217]]
          %s219 = smul.addr %s218, 16
          %s220 = scalar_lea.hbm %s1, %s219
          %s221 = sadd.s32 1, %s203
          %s222 = scalar_lea.vmem [#allocation2], %s221
          %s223 = scalar_lea.sflag [#allocation3], %s221
          // Predicated region
          $region57: #{tpu_custom_call.1} parent=51 // pred_check
            _
          $region58: #{tpu_custom_call.1} parent=51 // pred_check_branch
            %225 = sbr.rel target = $region60
          $region59: #{tpu_custom_call.1} parent=51 // pred_region
            %226 = sst [smem:[#allocation10]] [#allocation29]
            %227 = sst [smem:[#allocation11]] [#allocation28]
          $region60: #{tpu_custom_call.1} parent=51 // pred_fallthru
            _
          %229 = shalt.err (0)
          %s231 = sshll.u32 %s222, 4
          %s232 = int_to_ptr.vmem [resolvable:$true] %s231
          %234 = dma.hbm_to_vmem [thread:$0]  %s220, 16, %s232, %s223
          %s235 = sadd.s32 %s199, 2
          %s236 = sld [smem:[#allocation5 + %s235]]
          %s237 = smul.addr %s236, 16
          %s238 = scalar_lea.hbm %s1, %s237
          %s239 = sadd.s32 2, %s203
          %s240 = scalar_lea.vmem [#allocation2], %s239
          %s241 = scalar_lea.sflag [#allocation3], %s239
          // Predicated region
          $region61: #{tpu_custom_call.1} parent=51 // pred_check
            _
          $region62: #{tpu_custom_call.1} parent=51 // pred_check_branch
            %243 = sbr.rel target = $region64
          $region63: #{tpu_custom_call.1} parent=51 // pred_region
            %244 = sst [smem:[#allocation10]] [#allocation31]
            %245 = sst [smem:[#allocation11]] [#allocation30]
          $region64: #{tpu_custom_call.1} parent=51 // pred_fallthru
            _
          %247 = shalt.err (0)
          %s249 = sshll.u32 %s240, 4
          %s250 = int_to_ptr.vmem [resolvable:$true] %s249
          %252 = dma.hbm_to_vmem [thread:$0]  %s238, 16, %s250, %s241
          %s253 = sadd.s32 %s199, 3
          %s254 = sld [smem:[#allocation5 + %s253]]
          %s255 = smul.addr %s254, 16
          %s256 = scalar_lea.hbm %s1, %s255
          %s257 = sadd.s32 3, %s203
          %s258 = scalar_lea.vmem [#allocation2], %s257
          %s259 = scalar_lea.sflag [#allocation3], %s257
          // Predicated region
          $region65: #{tpu_custom_call.1} parent=51 // pred_check
            _
          $region66: #{tpu_custom_call.1} parent=51 // pred_check_branch
            %261 = sbr.rel target = $region68
          $region67: #{tpu_custom_call.1} parent=51 // pred_region
            %262 = sst [smem:[#allocation10]] [#allocation33]
            %263 = sst [smem:[#allocation11]] [#allocation32]
          $region68: #{tpu_custom_call.1} parent=51 // pred_fallthru
            _
          %265 = shalt.err (0)
          %s267 = sshll.u32 %s258, 4
          %s268 = int_to_ptr.vmem [resolvable:$true] %s267
          %270 = dma.hbm_to_vmem [thread:$0]  %s256, 16, %s268, %s259
          %s271 = sadd.s32 %s199, 4
          %s272 = sld [smem:[#allocation5 + %s271]]
          %s273 = smul.addr %s272, 16
          %s274 = scalar_lea.hbm %s1, %s273
          %s275 = sadd.s32 4, %s203
          %s276 = scalar_lea.vmem [#allocation2], %s275
          %s277 = scalar_lea.sflag [#allocation3], %s275
          // Predicated region
          $region69: #{tpu_custom_call.1} parent=51 // pred_check
            _
          $region70: #{tpu_custom_call.1} parent=51 // pred_check_branch
            %279 = sbr.rel target = $region72
          $region71: #{tpu_custom_call.1} parent=51 // pred_region
            %280 = sst [smem:[#allocation10]] [#allocation35]
            %281 = sst [smem:[#allocation11]] [#allocation34]
          $region72: #{tpu_custom_call.1} parent=51 // pred_fallthru
            _
          %283 = shalt.err (0)
          %s285 = sshll.u32 %s276, 4
          %s286 = int_to_ptr.vmem [resolvable:$true] %s285
          %288 = dma.hbm_to_vmem [thread:$0]  %s274, 16, %s286, %s277
          %s289 = sadd.s32 %s199, 5
          %s290 = sld [smem:[#allocation5 + %s289]]
          %s291 = smul.addr %s290, 16
          %s292 = scalar_lea.hbm %s1, %s291
          %s293 = sadd.s32 5, %s203
          %s294 = scalar_lea.vmem [#allocation2], %s293
          %s295 = scalar_lea.sflag [#allocation3], %s293
          // Predicated region
          $region73: #{tpu_custom_call.1} parent=51 // pred_check
            _
          $region74: #{tpu_custom_call.1} parent=51 // pred_check_branch
            %297 = sbr.rel target = $region76
          $region75: #{tpu_custom_call.1} parent=51 // pred_region
            %298 = sst [smem:[#allocation10]] [#allocation37]
            %299 = sst [smem:[#allocation11]] [#allocation36]
          $region76: #{tpu_custom_call.1} parent=51 // pred_fallthru
            _
          %301 = shalt.err (0)
          %s303 = sshll.u32 %s294, 4
          %s304 = int_to_ptr.vmem [resolvable:$true] %s303
          %306 = dma.hbm_to_vmem [thread:$0]  %s292, 16, %s304, %s295
          %s307 = sadd.s32 %s199, 6
          %s308 = sld [smem:[#allocation5 + %s307]]
          %s309 = smul.addr %s308, 16
          %s310 = scalar_lea.hbm %s1, %s309
          %s311 = sadd.s32 6, %s203
          %s312 = scalar_lea.vmem [#allocation2], %s311
          %s313 = scalar_lea.sflag [#allocation3], %s311
          // Predicated region
          $region77: #{tpu_custom_call.1} parent=51 // pred_check
            _
          $region78: #{tpu_custom_call.1} parent=51 // pred_check_branch
            %315 = sbr.rel target = $region80
          $region79: #{tpu_custom_call.1} parent=51 // pred_region
            %316 = sst [smem:[#allocation10]] [#allocation39]
            %317 = sst [smem:[#allocation11]] [#allocation38]
          $region80: #{tpu_custom_call.1} parent=51 // pred_fallthru
            _
          %319 = shalt.err (0)
          %s321 = sshll.u32 %s312, 4
          %s322 = int_to_ptr.vmem [resolvable:$true] %s321
          %324 = dma.hbm_to_vmem [thread:$0]  %s310, 16, %s322, %s313
          %s325 = sadd.s32 %s199, 7
          %s326 = sld [smem:[#allocation5 + %s325]]
          %s327 = smul.addr %s326, 16
          %s328 = scalar_lea.hbm %s1, %s327
          %s329 = sadd.s32 7, %s203
          %s330 = scalar_lea.vmem [#allocation2], %s329
          %s331 = scalar_lea.sflag [#allocation3], %s329
          // Predicated region
          $region81: #{tpu_custom_call.1} parent=51 // pred_check
            _
          $region82: #{tpu_custom_call.1} parent=51 // pred_check_branch
            %333 = sbr.rel target = $region84
          $region83: #{tpu_custom_call.1} parent=51 // pred_region
            %334 = sst [smem:[#allocation10]] [#allocation41]
            %335 = sst [smem:[#allocation11]] [#allocation40]
          $region84: #{tpu_custom_call.1} parent=51 // pred_fallthru
            _
          %337 = shalt.err (0)
          %s339 = sshll.u32 %s330, 4
          %s340 = int_to_ptr.vmem [resolvable:$true] %s339
          %342 = dma.hbm_to_vmem [thread:$0]  %s328, 16, %s340, %s331
        $region52: #{tpu_custom_call.1} parent=11 // pred_fallthru
          _
        %p343 = scmp.lt.s32.totalorder %s15, 0
        %s344 = ssub.s32 0, %s15
        %s345 = scalar_select %p343, %s344, %s15
        %s346 = sand.u32 %s345, 1
        %s347 = ssub.s32 0, %s346
        %s348 = scalar_select %p343, %s347, %s346
        %p349 = scmp.ne.s32.totalorder %s348, 0
        %p350 = scmp.lt.s32.totalorder %s348, 0
        %p351 = pnand %p350, %p349
        %p352 = pneg %p351
        %s353 = sadd.s32 %s348, 2
        %s354 = scalar_select %p352, %s353, %s348
        %s355 = smul.u32 %s354, 8
        %s356 = scalar_lea.sflag [#allocation3], %s355
        %358 = dma.done %s356, 16
        %s359 = sadd.s32 1, %s355
        %s360 = scalar_lea.sflag [#allocation3], %s359
        %362 = dma.done %s360, 16
        %s363 = sadd.s32 2, %s355
        %s364 = scalar_lea.sflag [#allocation3], %s363
        %366 = dma.done %s364, 16
        %s367 = sadd.s32 3, %s355
        %s368 = scalar_lea.sflag [#allocation3], %s367
        %370 = dma.done %s368, 16
        %s371 = sadd.s32 4, %s355
        %s372 = scalar_lea.sflag [#allocation3], %s371
        %374 = dma.done %s372, 16
        %s375 = sadd.s32 5, %s355
        %s376 = scalar_lea.sflag [#allocation3], %s375
        %378 = dma.done %s376, 16
        %s379 = sadd.s32 6, %s355
        %s380 = scalar_lea.sflag [#allocation3], %s379
        %382 = dma.done %s380, 16
        %s383 = sadd.s32 7, %s355
        %s384 = scalar_lea.sflag [#allocation3], %s383
        %386 = dma.done %s384, 16
        %s387 = scalar_lea.vmem [#allocation2], %s355
        %v388 = vld [vmem:[%s387] sm:$0xff]
        %389 = vst [vmem:[%s51] sm:$0xff] %v388
        %s390 = sand.u32 %s24, 1
        %s391 = scalar_lea.sflag [#allocation7], %s390
        %s392 = sand.u32 %s24, 1
        %s393 = smul.addr %s392, 8
        %s394 = scalar_lea.vmem [#allocation6], %s393
        // Predicated region
        $region85: #{tpu_custom_call.1} parent=11 // pred_check
          %p395 = pneg %p30
        $region86: #{tpu_custom_call.1} parent=11 // pred_check_branch
          %397 = sbr.rel (%p395) target = $region88
        $region87: #{tpu_custom_call.1} parent=11 // pred_region
          %s399 = ssub.s32 128, 128
          %400 = vsyncadd %s391, %s399
          %s401 = smul.addr %s15, 128
          %s402 = scalar_lea.hbm %s2, %s401
          %s404 = sshll.u32 %s394, 4
          %s405 = int_to_ptr.vmem [resolvable:$true] %s404
          %407 = dma.vmem_to_hbm [thread:$0]  %s405, 128, %s402, %s391
        $region88: #{tpu_custom_call.1} parent=11 // pred_fallthru
          _
      $region12: #{tpu_custom_call.1} parent=5 // pred_fallthru
        _
      %p408 = scmp.le.s32.totalorder 1, %s15
      // Predicated region
      $region89: #{tpu_custom_call.1} parent=5 // pred_check
        %p409 = pneg %p408
      $region90: #{tpu_custom_call.1} parent=5 // pred_check_branch
        %411 = sbr.rel (%p409) target = $region92
      $region91: #{tpu_custom_call.1} parent=5 // pred_region
        %s412 = ssub.s32 %s15, 1
        // Predicated region
        $region93: #{tpu_custom_call.1} parent=91 // pred_check
          %p413 = pneg %p36
        $region94: #{tpu_custom_call.1} parent=91 // pred_check_branch
          %415 = sbr.rel (%p413) target = $region96
        $region95: #{tpu_custom_call.1} parent=91 // pred_region
          %s416 = sand.u32 %s27, 1
          %s417 = scalar_lea.sflag [#allocation7], %s416
          %s418 = sand.u32 %s27, 1
          %s419 = smul.addr %s418, 8
          %s420 = scalar_lea.vmem [#allocation6], %s419
          %421 = dma.done %s417, 128
        $region96: #{tpu_custom_call.1} parent=91 // pred_fallthru
          _
      $region92: #{tpu_custom_call.1} parent=5 // pred_fallthru
        _
    $region6: #{tpu_custom_call.1} parent=1 // loop_footer
      %s19 = sadd.s32 1, %s15
    $region7: #{tpu_custom_call.1} parent=1 // loop_footer_branch
      %14 = sbr.rel target = $region3
    $region8: #{tpu_custom_call.1} parent=1 // loop_exit
      _
    %422 = vsyncpa [#allocation7], 1
    %s423 = scalar_lea.sflag [#allocation7], 1
    %424 = vsyncpa %s423, 1
  %425 = vsyncmov [#allocation3]
  %s426 = vpop.sfrf %425
  %p427 = scmp.eq.s32.totalorder %s426, 0
  %p428 = pneg %p427
  %430 = shalt.err (%p428)
  %s431 = scalar_lea.sflag [#allocation3], 1
  %432 = vsyncmov %s431
  %s433 = vpop.sfrf %432
  %p434 = scmp.eq.s32.totalorder %s433, 0
  %p435 = pneg %p434
  %437 = shalt.err (%p435)
  %s438 = scalar_lea.sflag [#allocation3], 2
  %439 = vsyncmov %s438
  %s440 = vpop.sfrf %439
  %p441 = scmp.eq.s32.totalorder %s440, 0
  %p442 = pneg %p441
  %444 = shalt.err (%p442)
  %s445 = scalar_lea.sflag [#allocation3], 3
  %446 = vsyncmov %s445
  %s447 = vpop.sfrf %446
  %p448 = scmp.eq.s32.totalorder %s447, 0
  %p449 = pneg %p448
  %451 = shalt.err (%p449)
  %s452 = scalar_lea.sflag [#allocation3], 4
  %453 = vsyncmov %s452
  %s454 = vpop.sfrf %453
  %p455 = scmp.eq.s32.totalorder %s454, 0
  %p456 = pneg %p455
  %458 = shalt.err (%p456)
  %s459 = scalar_lea.sflag [#allocation3], 5
  %460 = vsyncmov %s459
  %s461 = vpop.sfrf %460
  %p462 = scmp.eq.s32.totalorder %s461, 0
  %p463 = pneg %p462
  %465 = shalt.err (%p463)
  %s466 = scalar_lea.sflag [#allocation3], 6
  %467 = vsyncmov %s466
  %s468 = vpop.sfrf %467
  %p469 = scmp.eq.s32.totalorder %s468, 0
  %p470 = pneg %p469
  %472 = shalt.err (%p470)
  %s473 = scalar_lea.sflag [#allocation3], 7
  %474 = vsyncmov %s473
  %s475 = vpop.sfrf %474
  %p476 = scmp.eq.s32.totalorder %s475, 0
  %p477 = pneg %p476
  %479 = shalt.err (%p477)
  %s480 = scalar_lea.sflag [#allocation3], 8
  %481 = vsyncmov %s480
  %s482 = vpop.sfrf %481
  %p483 = scmp.eq.s32.totalorder %s482, 0
  %p484 = pneg %p483
  %486 = shalt.err (%p484)
  %s487 = scalar_lea.sflag [#allocation3], 9
  %488 = vsyncmov %s487
  %s489 = vpop.sfrf %488
  %p490 = scmp.eq.s32.totalorder %s489, 0
  %p491 = pneg %p490
  %493 = shalt.err (%p491)
  %s494 = scalar_lea.sflag [#allocation3], 10
  %495 = vsyncmov %s494
  %s496 = vpop.sfrf %495
  %p497 = scmp.eq.s32.totalorder %s496, 0
  %p498 = pneg %p497
  %500 = shalt.err (%p498)
  %s501 = scalar_lea.sflag [#allocation3], 11
  %502 = vsyncmov %s501
  %s503 = vpop.sfrf %502
  %p504 = scmp.eq.s32.totalorder %s503, 0
  %p505 = pneg %p504
  %507 = shalt.err (%p505)
  %s508 = scalar_lea.sflag [#allocation3], 12
  %509 = vsyncmov %s508
  %s510 = vpop.sfrf %509
  %p511 = scmp.eq.s32.totalorder %s510, 0
  %p512 = pneg %p511
  %514 = shalt.err (%p512)
  %s515 = scalar_lea.sflag [#allocation3], 13
  %516 = vsyncmov %s515
  %s517 = vpop.sfrf %516
  %p518 = scmp.eq.s32.totalorder %s517, 0
  %p519 = pneg %p518
  %521 = shalt.err (%p519)
  %s522 = scalar_lea.sflag [#allocation3], 14
  %523 = vsyncmov %s522
  %s524 = vpop.sfrf %523
  %p525 = scmp.eq.s32.totalorder %s524, 0
  %p526 = pneg %p525
  %528 = shalt.err (%p526)
  %s529 = scalar_lea.sflag [#allocation3], 15
  %530 = vsyncmov %s529
  %s531 = vpop.sfrf %530
  %p532 = scmp.eq.s32.totalorder %s531, 0
  %p533 = pneg %p532
  %535 = shalt.err (%p533)

</llo_original>
